<compile_context>
chip_gen: v7x
topology: tpu7x:2x2x1
jax: 0.10.0
libtpu: 0.0.40
codegen_flags: <defaults>
</compile_context>

<pallas_src>
import math

import jax
import jax.numpy as jnp
from jax import lax
from jax.experimental import pallas as pl
from jax.experimental.pallas import tpu as pltpu


# (tm, tk) x (tn, tk) -> (tm, tn): contract last dim of both operands.
_CONTRACT_LAST = (((1,), (1,)), ((), ()))


def _matmul_kernel_acc(x_ref, w_ref, o_ref, acc_ref):
    """K-tiled matmul with a resident f32 accumulator. grid = (M, N, K)."""
    @pl.when(pl.program_id(2) == 0)
    def _():
        acc_ref[...] = jnp.zeros_like(acc_ref)

    acc_ref[...] += lax.dot_general(
        x_ref[...], w_ref[...],
        dimension_numbers=_CONTRACT_LAST,
        preferred_element_type=jnp.float32,
    )

    @pl.when(pl.program_id(2) == pl.num_programs(2) - 1)
    def _():
        o_ref[...] = acc_ref[...].astype(o_ref.dtype)


def _matmul_kernel_single_k(x_ref, w_ref, o_ref):
    """Single K block: no scratch accumulator, direct writeback. grid = (M, N)."""
    o_ref[...] = lax.dot_general(
        x_ref[...], w_ref[...],
        dimension_numbers=_CONTRACT_LAST,
        preferred_element_type=jnp.float32,
    ).astype(o_ref.dtype)


def _largest_aligned_divisor(d: int, cap: int = 1024) -> int:
    """Largest multiple-of-128 divisor of d that is <= cap (d must be 128-aligned)."""
    c = min(cap, d)
    c -= c % 128
    while c > 128:
        if d % c == 0:
            return c
        c -= 128
    return 128


def _pick_m_tile(m: int) -> int:
    # Large row tiles amortize per-step overhead and divide the weight
    # re-streaming factor ceil(M/tm). Partial edge blocks along M are fine.
    for c in (1024, 512, 256, 128):
        if m >= c:
            return c
    return m  # m < 128: whole dim is always a legal block shape


def _pick_n_tile(d_out: int) -> int:
    # Lane-dense (multiple of 128) tiles with cdiv edge blocks; out-of-bounds
    # output columns are dropped on writeback, so any d_out is safe.
    if d_out < 128:
        return d_out  # tiny head: whole dim (legal block shape)
    return min(512, (d_out // 128) * 128)


def _vmem_capacity_bytes() -> int:
    try:
        return int(pltpu.get_tpu_info().vmem_capacity_bytes)
    except Exception:
        return 64 * 1024 * 1024  # conservative (v7x per-TC size)


def linear_nobias(x: jax.Array, weight: jax.Array) -> jax.Array:
    """Computes einsum('... d_in, d_out d_in -> ... d_out', x, weight)."""
    *lead, d_in = x.shape
    d_out, d_in_w = weight.shape
    assert d_in == d_in_w, "feature dim mismatch"

    m = int(math.prod(lead)) if lead else 1
    x2 = x.reshape(m, d_in)
    w = weight  # stays (d_out, d_in): no per-call transpose through HBM

    # ---- K tiling. The contraction axis must be covered exactly (no garbage
    # may be summed into valid outputs): tk divides d_in, or we zero-pad.
    if d_in % 128 == 0:
        d_in_eff = d_in
        tk = _largest_aligned_divisor(d_in, cap=1024)
    elif d_in <= 2048:
        d_in_eff = d_in
        tk = d_in  # one whole-K block (legal: equals the full dim), stays small
    else:
        # Large unaligned d_in: zero-pad both operands along K so tiles stay
        # bounded (zeros contribute nothing to the contraction).
        # TODO(synk): cache the padded weight across calls in a real module.
        d_in_eff = ((d_in + 127) // 128) * 128
        pad = d_in_eff - d_in
        x2 = jnp.pad(x2, ((0, 0), (0, pad)))
        w = jnp.pad(w, ((0, 0), (0, pad)))
        tk = _largest_aligned_divisor(d_in_eff, cap=1024)

    tm = _pick_m_tile(m)
    tn = _pick_n_tile(d_out)
    grid_m = pl.cdiv(m, tm)
    grid_n = pl.cdiv(d_out, tn)

    # v7x has 2 TensorCores: ensure at least one "parallel" axis has >= 2
    # blocks so both cores get work on small shapes.
    if grid_m == 1 and grid_n == 1:
        if d_out >= 256:
            tn = 128 * pl.cdiv(pl.cdiv(d_out, 2), 128)
            grid_n = pl.cdiv(d_out, tn)
        elif m >= 16:
            tm = 8 * pl.cdiv(pl.cdiv(m, 2), 8)
            grid_m = pl.cdiv(m, tm)

    grid_k = d_in_eff // tk

    x_item = jnp.dtype(x.dtype).itemsize
    w_item = jnp.dtype(weight.dtype).itemsize
    o_item = x_item

    # Double-buffered input/output tiles + f32 accumulator, with headroom,
    # capped below per-TensorCore physical VMEM (v7x 64 MiB; v5e/v6e 128 MiB).
    vmem_need = (2 * (tm * tk * x_item + tn * tk * w_item + tm * tn * o_item)
                 + tm * tn * 4)
    vmem_cap = int(0.75 * _vmem_capacity_bytes())
    vmem_limit = int(min(max(2 * vmem_need, 32 * 1024 * 1024), vmem_cap))

    # Actual HBM traffic: weight re-streamed once per M block, x once per N
    # block, output written once.
    cost = pl.CostEstimate(
        flops=2 * m * d_in * d_out,
        transcendentals=0,
        bytes_accessed=(d_out * d_in_eff * w_item * grid_m
                        + m * d_in_eff * x_item * grid_n
                        + m * d_out * o_item),
    )

    out_shape = jax.ShapeDtypeStruct((m, d_out), x.dtype)

    # NOTE: default MXU precision (bf16 passes, f32 accumulation) matches the
    # jnp.einsum reference; pass precision=HIGHEST in dot_general if bit-exact
    # f32 parity is ever required.
    if grid_k == 1:
        out = pl.pallas_call(
            _matmul_kernel_single_k,
            out_shape=out_shape,
            grid_spec=pltpu.PrefetchScalarGridSpec(
                num_scalar_prefetch=0,
                grid=(grid_m, grid_n),
                in_specs=[
                    pl.BlockSpec((tm, tk), lambda i, j: (i, 0)),
                    pl.BlockSpec((tn, tk), lambda i, j: (j, 0)),
                ],
                out_specs=pl.BlockSpec((tm, tn), lambda i, j: (i, j)),
            ),
            compiler_params=pltpu.CompilerParams(
                dimension_semantics=("parallel", "parallel"),
                vmem_limit_bytes=vmem_limit,
            ),
            cost_estimate=cost,
        )(x2, w)
    else:
        out = pl.pallas_call(
            _matmul_kernel_acc,
            out_shape=out_shape,
            grid_spec=pltpu.PrefetchScalarGridSpec(
                num_scalar_prefetch=0,
                grid=(grid_m, grid_n, grid_k),
                in_specs=[
                    pl.BlockSpec((tm, tk), lambda i, j, k: (i, k)),
                    pl.BlockSpec((tn, tk), lambda i, j, k: (j, k)),
                ],
                out_specs=pl.BlockSpec((tm, tn), lambda i, j, k: (i, j)),
                scratch_shapes=[pltpu.VMEM((tm, tn), jnp.float32)],
            ),
            compiler_params=pltpu.CompilerParams(
                dimension_semantics=("parallel", "parallel", "arbitrary"),
                vmem_limit_bytes=vmem_limit,
            ),
            cost_estimate=cost,
        )(x2, w)

    return out.reshape(*lead, d_out)


def init_trunc_normal_linear(key: jax.Array, d_out: int, d_in: int,
                             dtype=jnp.float32) -> jax.Array:
    """N(0, 2/(d_in+d_out)) truncated at ±3σ, matching the PyTorch init."""
    std = math.sqrt(2.0 / (d_in + d_out))
    w = jax.random.truncated_normal(key, -3.0, 3.0, (d_out, d_in), jnp.float32) * std
    return w.astype(dtype)


if __name__ == "__main__":
    key = jax.random.PRNGKey(0)
    k_x, k_w, k_x2, k_w2 = jax.random.split(key, 4)

    # Small shape consistent with the module (single-K-block, no-scratch path).
    batch, seq, d_in, d_out = 2, 8, 32, 64
    x = jax.random.normal(k_x, (batch, seq, d_in), dtype=jnp.float32)
    weight = init_trunc_normal_linear(k_w, d_out, d_in)  # (d_out, d_in)

    y = jax.block_until_ready(linear_nobias(x, weight))
    y_ref = jnp.einsum("...i,oi->...o", x, weight)
    assert y.shape == (batch, seq, d_out)
    assert jnp.allclose(y, y_ref, atol=1e-5, rtol=1e-5)

    # Modest tiled shape exercising the (M, N, K) accumulator path and the
    # ">=2 parallel blocks" split (m=512, d_in=2048 -> tk=1024, grid_k=2).
    b2, s2, d_in2, d_out2 = 2, 256, 2048, 512
    x_big = jax.random.normal(k_x2, (b2, s2, d_in2), dtype=jnp.float32)
    w_big = init_trunc_normal_linear(k_w2, d_out2, d_in2)
    y_big = jax.block_until_ready(linear_nobias(x_big, w_big))
    y_big_ref = jnp.einsum("...i,oi->...o", x_big, w_big)
    assert y_big.shape == (b2, s2, d_out2)
    assert jnp.allclose(y_big, y_big_ref, atol=2e-3, rtol=2e-3)

    print("KERNEL_OK")
</pallas_src>

<mosaic_0001>
module attributes {stable_mosaic.version = 11 : i64} {
  func.func @_matmul_kernel_single_k(%arg0: i32, %arg1: i32, %arg2: memref<8x32xf32, #tpu.memory_space<vmem>>, %arg3: memref<64x32xf32, #tpu.memory_space<vmem>>, %arg4: memref<8x64xf32, #tpu.memory_space<vmem>>) attributes {dimension_semantics = [#tpu.dimension_semantics<parallel>, #tpu.dimension_semantics<parallel>], iteration_bounds = array<i64: 2, 1>, scalar_prefetch = 0 : i64, scratch_operands = 0 : i64, tpu.core_type = #tpu.core_type<tc>, window_params = [{transform_indices = @transform_0, window_bounds = array<i64: 8, 32>}, {transform_indices = @transform_1, window_bounds = array<i64: 64, 32>}, {transform_indices = @transform_2, window_bounds = array<i64: 8, 64>}]} {
    %c0 = arith.constant 0 : index
    %c0_0 = arith.constant 0 : index
    %0 = vector.load %arg2[%c0, %c0_0] : memref<8x32xf32, #tpu.memory_space<vmem>>, vector<8x32xf32>
    %c0_1 = arith.constant 0 : index
    %c0_2 = arith.constant 0 : index
    %1 = vector.load %arg3[%c0_1, %c0_2] : memref<64x32xf32, #tpu.memory_space<vmem>>, vector<64x32xf32>
    %cst = arith.constant dense<0.000000e+00> : vector<8x64xf32>
    %2 = tpu.matmul %0, %1, %cst {dimension_numbers = #tpu.dot_dimension_numbers<[1], [1], [0], [0], [0, 0, 1, 0], [], []>} : vector<8x32xf32>, vector<64x32xf32>, vector<8x64xf32> -> vector<8x64xf32>
    %c0_3 = arith.constant 0 : index
    %c0_4 = arith.constant 0 : index
    %3 = vector.load %arg4[%c0_3, %c0_4] : memref<8x64xf32, #tpu.memory_space<vmem>>, vector<8x64xf32>
    tpu.vector_store %arg4[%c0_3, %c0_4], %2 {strides = array<i32>} : memref<8x64xf32, #tpu.memory_space<vmem>>, vector<8x64xf32>,
    return
  }
  func.func @transform_0(%arg0: i32, %arg1: i32) -> (i32, i32) {
    %c0_i32 = arith.constant 0 : i32
    %c0_i32_0 = arith.constant 0 : i32
    return %arg0, %c0_i32 : i32, i32
  }
  func.func @transform_1(%arg0: i32, %arg1: i32) -> (i32, i32) {
    %c0_i32 = arith.constant 0 : i32
    %c0_i32_0 = arith.constant 0 : i32
    return %arg1, %c0_i32 : i32, i32
  }
  func.func @transform_2(%arg0: i32, %arg1: i32) -> (i32, i32) {
    %c0_i32 = arith.constant 0 : i32
    return %arg0, %arg1 : i32, i32
  }
}

</mosaic_0001>

<llo_original>
// kernel: tpu_custom_call.1
$region0: #{tpu_custom_call.1}
  #allocation0 [shape = 'u32[]', space=smem, size = 0x4, offset = 0x4, fixed_abs, tag = 'smem constant byte address 0x4 - core index']
  #allocation1 [shape = 'u32[144,128]{1,0:T(1,128)}', space=vmem, size = 0x12000, scoped, tag = 'internal scratch']
  %s0 = inlined_call_operand.vmem [shape: f32[16,32], index: 0, kind: input, shape index: {}]
  %s1 = inlined_call_operand.vmem [shape: f32[64,32], index: 1, kind: input, shape index: {}]
  %s2 = inlined_call_operand.hbm [shape: f32[16,64], index: 2, kind: output, shape index: {}]
  %s3 = sld [smem:[#allocation0]]
  $region41: #{tpu_custom_call.1} parent=0
    _
  %s5 = ssub.s32 1, %s3
  %s6 = scalar_select 0, %s5, %s3
  $region1: #{tpu_custom_call.1} parent=0
    #allocation2 [shape = 'u8[8192]{0}', space=vmem, size = 0x2000, scoped, tag = 'output window, operand 0']
    #allocation3 [shape = 's32[2]{0}', space=sflag, size = 0x8, scoped, tag = 'scoped memory for tpu_custom_call.1']
    %7 = vsyncpa [#allocation3], 0
    %s8 = scalar_lea.sflag [#allocation3], 1
    %9 = vsyncpa %s8, 0
    loop: start=0, step=1, limit=4
    $region2: #{tpu_custom_call.1} parent=1 // loop_pre_header
      _
    $region3: #{tpu_custom_call.1} parent=1 // loop_header
      %s11 = sphi 0, %s15
      %p12 = scmp.ge.s32.totalorder %s11, 4
      %s18 = sphi 0, %s30
      %s19 = sphi 0, %s26
      %s20 = sphi 0, %s18
      %s21 = sphi 0, %s19
      %s22 = sphi 0, %s20
      %s23 = sphi 0, %s21
      %s33 = sphi 0, %s35
      %s36 = sphi 0, %s33
      %s37 = sphi 0, %s36
      %s53 = sphi 0, %s37
      %s59 = sphi 0, %s61
      %s62 = sphi 0, %s59
      %s63 = sphi 0, %s62
      %s79 = sphi 0, %s63
      %s87 = sphi 0, %s89
      %s90 = sphi 0, %s87
      %s91 = sphi 0, %s90
      %s107 = sphi 0, %s91
    $region4: #{tpu_custom_call.1} parent=1 // loop_header_branch
      %14 = sbr.rel (%p12) target = $region8
    $region5: #{tpu_custom_call.1} parent=1 // loop_body
      %s16 = ssub.s32 %s11, 1
      %s17 = ssub.s32 %s11, 2
      %s24 = sadd.s32 1, %s19
      %p25 = scmp.ge.s32.totalorder %s24, 1
      %s26 = scalar_select %p25, 0, %s24
      %s27 = sadd.s32 1, %s18
      %s28 = scalar_select %p25, %s27, %s18
      %p29 = scmp.ge.s32.totalorder %s28, 2
      %s30 = scalar_select %p29, 0, %s28
      %s31 = ssub.s32 %s18, %s30
      %p32 = scmp.eq.s32.totalorder %s31, 0
      %s34 = sadd.s32 %s33, 1
      %s35 = scalar_select %p32, %s33, %s34
      %p38 = pneg %p32
      %p39 = scmp.eq.s32.totalorder %s11, 1
      %p40 = por %p38, %p39
      %p41 = scmp.ne.s32.totalorder %s33, %s36
      %p42 = scmp.eq.s32.totalorder %s11, 0
      %p43 = por %p41, %p42
      %p44 = scmp.ne.s32.totalorder %s33, %s36
      %p45 = scmp.eq.s32.totalorder %s16, 1
      %p46 = por %p44, %p45
      %p47 = scmp.ne.s32.totalorder %s36, %s37
      %p48 = scmp.eq.s32.totalorder %s16, 0
      %p49 = por %p47, %p48
      %p50 = scmp.ne.s32.totalorder %s36, %s37
      %p51 = scmp.eq.s32.totalorder %s17, 1
      %p52 = por %p50, %p51
      %p54 = scmp.ne.s32.totalorder %s37, %s53
      %p55 = scmp.eq.s32.totalorder %s17, 0
      %p56 = por %p54, %p55
      %s57 = ssub.s32 %s19, %s26
      %p58 = scmp.eq.s32.totalorder %s57, 0
      %s60 = sadd.s32 %s59, 1
      %s61 = scalar_select %p58, %s59, %s60
      %p64 = pneg %p58
      %p65 = scmp.eq.s32.totalorder %s11, 1
      %p66 = por %p64, %p65
      %p67 = scmp.ne.s32.totalorder %s59, %s62
      %p68 = scmp.eq.s32.totalorder %s11, 0
      %p69 = por %p67, %p68
      %p70 = scmp.ne.s32.totalorder %s59, %s62
      %p71 = scmp.eq.s32.totalorder %s16, 1
      %p72 = por %p70, %p71
      %p73 = scmp.ne.s32.totalorder %s62, %s63
      %p74 = scmp.eq.s32.totalorder %s16, 0
      %p75 = por %p73, %p74
      %p76 = scmp.ne.s32.totalorder %s62, %s63
      %p77 = scmp.eq.s32.totalorder %s17, 1
      %p78 = por %p76, %p77
      %p80 = scmp.ne.s32.totalorder %s63, %s79
      %p81 = scmp.eq.s32.totalorder %s17, 0
      %p82 = por %p80, %p81
      %s83 = ssub.s32 %s18, %s30
      %s84 = ssub.s32 %s19, %s26
      %s85 = sor.u32 %s83, %s84
      %p86 = scmp.eq.s32.totalorder %s85, 0
      %s88 = sadd.s32 %s87, 1
      %s89 = scalar_select %p86, %s87, %s88
      %p92 = pneg %p86
      %p93 = scmp.eq.s32.totalorder %s11, 1
      %p94 = por %p92, %p93
      %p95 = scmp.ne.s32.totalorder %s87, %s90
      %p96 = scmp.eq.s32.totalorder %s11, 0
      %p97 = por %p95, %p96
      %p98 = scmp.ne.s32.totalorder %s87, %s90
      %p99 = scmp.eq.s32.totalorder %s16, 1
      %p100 = por %p98, %p99
      %p101 = scmp.ne.s32.totalorder %s90, %s91
      %p102 = scmp.eq.s32.totalorder %s16, 0
      %p103 = por %p101, %p102
      %p104 = scmp.ne.s32.totalorder %s90, %s91
      %p105 = scmp.eq.s32.totalorder %s17, 1
      %p106 = por %p104, %p105
      %p108 = scmp.ne.s32.totalorder %s91, %s107
      %p109 = scmp.eq.s32.totalorder %s17, 0
      %p110 = por %p108, %p109
      %p111 = scmp.le.s32.totalorder 1, %s11
      %p112 = scmp.lt.s32.totalorder %s11, 3
      %p113 = pnand %p111, %p112
      %p114 = pneg %p113
      // Predicated region
      $region9: #{tpu_custom_call.1} parent=5 // pred_check
        _
      $region10: #{tpu_custom_call.1} parent=5 // pred_check_branch
        %116 = sbr.rel (%p113) target = $region12
      $region11: #{tpu_custom_call.1} parent=5 // pred_region
        %s117 = ssub.s32 %s11, 1
        // Predicated region
        $region13: #{tpu_custom_call.1} parent=11 // pred_check
          %p118 = pneg %p75
        $region14: #{tpu_custom_call.1} parent=11 // pred_check_branch
          %120 = sbr.rel (%p118) target = $region16
        $region15: #{tpu_custom_call.1} parent=11 // pred_region
          %s121 = smul.u32 8, %s21
          %p122 = scmp.lt.s32.totalorder %s121, 7
          %s123 = scalar_select %p122, %s121, 7
          %s124 = smul.addr %s123, 8
          %s125 = scalar_lea.vmem %s1, %s124
          %s126 = smul.u32 8, %s21
        $region16: #{tpu_custom_call.1} parent=11 // pred_fallthru
          _
      $region12: #{tpu_custom_call.1} parent=5 // pred_fallthru
        _
      %p127 = scmp.lt.s32.totalorder %s11, 2
      // Predicated region
      $region17: #{tpu_custom_call.1} parent=5 // pred_check
        %p128 = pneg %p127
      $region18: #{tpu_custom_call.1} parent=5 // pred_check_branch
        %130 = sbr.rel (%p128) target = $region20
      $region19: #{tpu_custom_call.1} parent=5 // pred_region
        // Predicated region
        $region21: #{tpu_custom_call.1} parent=19 // pred_check
          %p131 = pneg %p43
        $region22: #{tpu_custom_call.1} parent=19 // pred_check_branch
          %133 = sbr.rel (%p131) target = $region24
        $region23: #{tpu_custom_call.1} parent=19 // pred_region
          %p134 = scmp.lt.s32.totalorder %s18, 1
          %s135 = scalar_select %p134, %s18, 1
          %s136 = smul.addr %s135, 8
          %s137 = scalar_lea.vmem %s0, %s136
        $region24: #{tpu_custom_call.1} parent=19 // pred_fallthru
          _
      $region20: #{tpu_custom_call.1} parent=5 // pred_fallthru
        _
      %p138 = scmp.le.s32.totalorder 1, %s11
      %p139 = scmp.lt.s32.totalorder %s11, 3
      %p140 = pnand %p138, %p139
      %p141 = pneg %p140
      // Predicated region
      $region25: #{tpu_custom_call.1} parent=5 // pred_check
        _
      $region26: #{tpu_custom_call.1} parent=5 // pred_check_branch
        %143 = sbr.rel (%p140) target = $region28
      $region27: #{tpu_custom_call.1} parent=5 // pred_region
        %s144 = ssub.s32 %s11, 1
        %p145 = scmp.lt.s32.totalorder %s20, 1
        %s146 = scalar_select %p145, %s20, 1
        %s147 = smul.addr %s146, 8
        %s148 = scalar_lea.vmem %s0, %s147
        %p149 = pneg %p49
        %p150 = pneg %p46
        %s151 = smul.u32 8, %s21
        %p152 = scmp.lt.s32.totalorder %s151, 7
        %s153 = scalar_select %p152, %s151, 7
        %s154 = smul.addr %s153, 8
        %s155 = scalar_lea.vmem %s1, %s154
        %p156 = pneg %p75
        %p157 = pneg %p72
        %p158 = pneg %p103
        %p159 = pneg %p100
        %s160 = sand.u32 %s90, 1
        %s161 = scalar_lea.sflag [#allocation3], %s160
        %s162 = sand.u32 %s90, 1
        %s163 = smul.addr %s162, 8
        %s164 = scalar_lea.vmem [#allocation2], %s163
        %p165 = scmp.lt.s32.totalorder %s20, 1
        %s166 = scalar_select %p165, %s20, 1
        %s167 = smul.addr %s166, 8
        %s168 = scalar_lea.vmem %s0, %s167
        %s169 = smul.u32 8, %s21
        %p170 = scmp.lt.s32.totalorder %s169, 7
        %s171 = scalar_select %p170, %s169, 7
        %s172 = smul.addr %s171, 8
        %s173 = scalar_lea.vmem %s1, %s172
        %s174 = smul.u32 8, %s21
        %v175 = vld [vmem:[%s168] sm:$0xff]
        %v176 = vld [vmem:[%s173] sm:$0xff]
        %v177 = vld [vmem:[%s173 + $0x8] sm:$0xff]
        %v178 = vld [vmem:[%s173 + $0x10] sm:$0xff]
        %v179 = vld [vmem:[%s173 + $0x18] sm:$0xff]
        %v180 = vld [vmem:[%s173 + $0x20] sm:$0xff]
        %v181 = vld [vmem:[%s173 + $0x28] sm:$0xff]
        %v182 = vld [vmem:[%s173 + $0x30] sm:$0xff]
        %v183 = vld [vmem:[%s173 + $0x38] sm:$0xff]
        %vm184 = vcmask 261120
        %v186 = vsel %vm184, %v175, 0
        %v189 = vsel %vm184, %v176, 0
        %v192 = vsel %vm184, %v177, 0
        %v195 = vsel %vm184, %v178, 0
        %v198 = vsel %vm184, %v179, 0
        %v201 = vsel %vm184, %v180, 0
        %v204 = vsel %vm184, %v181, 0
        %v207 = vsel %vm184, %v182, 0
        %v210 = vsel %vm184, %v183, 0
        %212 = vmatprep.subr.mxu0 0.0
        %213 = vmatpush1.xpose.msra.mxu0 %v189
        %214 = vmatprep.subr.mxu0 0.0
        %215 = vmatpush1.xpose.msra.mxu0 %v192
        %216 = vmatprep.subr.mxu0 0.0
        %217 = vmatpush1.xpose.msra.mxu0 %v195
        %218 = vmatprep.subr.mxu0 0.0
        %219 = vmatpush1.xpose.msra.mxu0 %v198
        %220 = vmatprep.subr.mxu0 0.0
        %221 = vmatpush1.xpose.msra.mxu0 %v201
        %222 = vmatprep.subr.mxu0 0.0
        %223 = vmatpush1.xpose.msra.mxu0 %v204
        %224 = vmatprep.subr.mxu0 0.0
        %225 = vmatpush1.xpose.msra.mxu0 %v207
        %226 = vmatprep.subr.mxu0 0.0
        %227 = vmatpush1.xpose.msra.mxu0 %v210
        %228 = vmatprep.subr.mxu0 0.0
        %229 = vmatpush1.xpose.msra.mxu0 0.0
        %230 = vmatprep.subr.mxu0 0.0
        %231 = vmatpush1.xpose.msra.mxu0 0.0
        %232 = vmatprep.subr.mxu0 0.0
        %233 = vmatpush1.xpose.msra.mxu0 0.0
        %234 = vmatprep.subr.mxu0 0.0
        %235 = vmatpush1.xpose.msra.mxu0 0.0
        %236 = vmatprep.subr.mxu0 0.0
        %237 = vmatpush1.xpose.msra.mxu0 0.0
        %238 = vmatprep.subr.mxu0 0.0
        %239 = vmatpush1.xpose.msra.mxu0 0.0
        %240 = vmatprep.subr.mxu0 0.0
        %241 = vmatpush1.xpose.msra.mxu0 0.0
        %242 = vmatprep.subr.mxu0 0.0
        %243 = vmatpush1.xpose.msra.mxu0 0.0
        %244 = vmatprep.subr.mxu0 0.0
        %245 = vmatpush1.xpose.msra.mxu0 0.0
        %246 = vmatprep.subr.mxu0 0.0
        %247 = vmatpush1.xpose.msra.mxu0 0.0
        %248 = vmatprep.subr.mxu0 0.0
        %249 = vmatpush1.xpose.msra.mxu0 0.0
        %250 = vmatprep.subr.mxu0 0.0
        %251 = vmatpush1.xpose.msra.mxu0 0.0
        %252 = vmatprep.subr.mxu0 0.0
        %253 = vmatpush1.xpose.msra.mxu0 0.0
        %254 = vmatprep.subr.mxu0 0.0
        %255 = vmatpush1.xpose.msra.mxu0 0.0
        %256 = vmatprep.subr.mxu0 0.0
        %257 = vmatpush1.xpose.msra.mxu0 0.0
        %258 = vmatprep.subr.mxu0 0.0
        %259 = vmatpush1.xpose.msra.mxu0 0.0
        %260 = vmatprep.subr.mxu0 0.0
        %261 = vmatpush1.xpose.msra.mxu0 0.0
        %262 = vmatprep.subr.mxu0 0.0
        %263 = vmatpush1.xpose.msra.mxu0 0.0
        %264 = vmatprep.subr.mxu0 0.0
        %265 = vmatpush1.xpose.msra.mxu0 0.0
        %266 = vmatprep.subr.mxu0 0.0
        %267 = vmatpush1.xpose.msra.mxu0 0.0
        %268 = vmatprep.subr.mxu0 0.0
        %269 = vmatpush1.xpose.msra.mxu0 0.0
        %270 = vmatprep.subr.mxu0 0.0
        %271 = vmatpush1.xpose.msra.mxu0 0.0
        %272 = vmatprep.subr.mxu0 0.0
        %273 = vmatpush1.xpose.msra.mxu0 0.0
        %274 = vmatprep.subr.mxu0 0.0
        %275 = vmatpush1.xpose.msra.mxu0 0.0
        %276 = vmatprep.mubr.f32.mxu0 0.0
        %277 = vmatmul.mubr.f32.gmra.mrb[0].mxu0 %v186
        %v278 = vpop.f32.mrb[0].mxu0
        %v279 = vadd.f32 0.0, %v278
        %v280 = vpop.f32.mrb[0].mxu0
        %281 = vdwg.mxu0
        %vm282 = vcmask 523264
        %283 = vst.msk [vmem:[%s164] sm:$0xff] %vm282, %v279
        %s284 = sand.u32 %s90, 1
        %s285 = scalar_lea.sflag [#allocation3], %s284
        %s286 = sand.u32 %s90, 1
        %s287 = smul.addr %s286, 8
        %s288 = scalar_lea.vmem [#allocation2], %s287
        // Predicated region
        $region29: #{tpu_custom_call.1} parent=27 // pred_check
          %p289 = pneg %p100
        $region30: #{tpu_custom_call.1} parent=27 // pred_check_branch
          %291 = sbr.rel (%p289) target = $region32
        $region31: #{tpu_custom_call.1} parent=27 // pred_region
          %s293 = ssub.s32 128, 128
          %294 = vsyncadd %s285, %s293
          %s295 = sadd.s32 %s21, %s20
          %s296 = smul.addr %s295, 128
          %s297 = scalar_lea.hbm %s2, %s296
          %s299 = sshll.u32 %s288, 4
          %s300 = int_to_ptr.vmem [resolvable:$true] %s299
          %302 = dma.vmem_to_hbm [thread:$0]  %s300, 128, %s297, %s285
        $region32: #{tpu_custom_call.1} parent=27 // pred_fallthru
          _
      $region28: #{tpu_custom_call.1} parent=5 // pred_fallthru
        _
      %p303 = scmp.le.s32.totalorder 2, %s11
      // Predicated region
      $region33: #{tpu_custom_call.1} parent=5 // pred_check
        %p304 = pneg %p303
      $region34: #{tpu_custom_call.1} parent=5 // pred_check_branch
        %306 = sbr.rel (%p304) target = $region36
      $region35: #{tpu_custom_call.1} parent=5 // pred_region
        %s307 = ssub.s32 %s11, 2
        // Predicated region
        $region37: #{tpu_custom_call.1} parent=35 // pred_check
          %p308 = pneg %p106
        $region38: #{tpu_custom_call.1} parent=35 // pred_check_branch
          %310 = sbr.rel (%p308) target = $region40
        $region39: #{tpu_custom_call.1} parent=35 // pred_region
          %s311 = sand.u32 %s91, 1
          %s312 = scalar_lea.sflag [#allocation3], %s311
          %s313 = sand.u32 %s91, 1
          %s314 = smul.addr %s313, 8
          %s315 = scalar_lea.vmem [#allocation2], %s314
          %316 = dma.done %s312, 128
        $region40: #{tpu_custom_call.1} parent=35 // pred_fallthru
          _
      $region36: #{tpu_custom_call.1} parent=5 // pred_fallthru
        _
    $region6: #{tpu_custom_call.1} parent=1 // loop_footer
      %s15 = sadd.s32 1, %s11
    $region7: #{tpu_custom_call.1} parent=1 // loop_footer_branch
      %10 = sbr.rel target = $region3
    $region8: #{tpu_custom_call.1} parent=1 // loop_exit
      _
    %317 = vsyncpa [#allocation3], 1
    %s318 = scalar_lea.sflag [#allocation3], 1
    %319 = vsyncpa %s318, 1

</llo_original>
